<compile_context>
chip_gen: v6e
topology: v6e:2x2x1
jax: 0.10.0
libtpu: 0.0.40
codegen_flags: <defaults>
</compile_context>

<pallas_src>
import functools

import jax
import jax.numpy as jnp
from jax.experimental import pallas as pl
from jax.experimental.pallas import tpu as pltpu


def _bias_swarm_kernel(wsum_ref, x_ref, bias_ref, o_ref):
    """One tile: y = x * sum(w) + agg_bias  (single VPU fma per element).

    wsum_ref: (1, 1) f32 in SMEM — scalar splat.
    x_ref:    (TR, TL) input tile.
    bias_ref: (TR, 1) or (1, TL) f32 aggregated-bias tile (broadcasts).
    o_ref:    (TR, TL) output tile.
    """
    w = wsum_ref[0, 0]
    # f32 accumulate: no-op casts for f32 inputs, keeps bf16 inputs exact on
    # v5e (no bf16 VALU).  Kernel is HBM-DMA-bound, so the casts are filler.
    x = x_ref[...].astype(jnp.float32)
    o_ref[...] = (x * w + bias_ref[...]).astype(o_ref.dtype)


def _round_up(n, m):
    return ((n + m - 1) // m) * m


def _choose_tile(n, max_tile, align):
    # Full dim is always a legal block; otherwise an `align`-multiple.
    return n if n <= max_tile else (max_tile // align) * align


@functools.partial(jax.jit, static_argnames=("max_rows", "max_lanes"))
def bias_iden_swarm(x_nchw, expert_biases, agg_weights, *,
                    max_rows=512, max_lanes=2048):
    """x_nchw: [B, C, H, W]; expert_biases: [E, C]; agg_weights: [E]."""
    B, C, H, W = x_nchw.shape
    spatial = H * W

    # Grid-invariant aggregation hoisted out of the kernel (O(E*C) work, f32).
    w = agg_weights.astype(jnp.float32)
    agg_bias = jnp.dot(w, expert_biases.astype(jnp.float32))     # [C] = w @ b
    w_sum = jnp.sum(w).reshape(1, 1)                             # (1,1) -> SMEM

    # Layout selection (both are free reshapes of NCHW — no transpose):
    #   rows mode : [B*C, H*W]   bias is a per-row column  (H*W % 128 == 0)
    #   lanes mode: [B, C*H*W]   bias is a per-lane row    (small / ragged H*W)
    rows_mode = (spatial % 128 == 0)
    if rows_mode:
        n_rows, n_lanes = B * C, spatial
        x_2d = x_nchw.reshape(n_rows, n_lanes)
        bias_2d = jnp.tile(agg_bias, B).reshape(n_rows, 1)
    else:
        n_rows, n_lanes = B, C * spatial
        x_2d = x_nchw.reshape(n_rows, n_lanes)
        bias_2d = jnp.repeat(agg_bias, spatial).reshape(1, n_lanes)

    tile_rows = _choose_tile(n_rows, max_rows, 8)
    tile_lanes = _choose_tile(n_lanes, max_lanes, 128)

    # v7x megacore: guarantee >= 2 blocks so both TensorCores get work.
    if pl.cdiv(n_rows, tile_rows) * pl.cdiv(n_lanes, tile_lanes) == 1:
        half_rows = _round_up(pl.cdiv(n_rows, 2), 8)
        half_lanes = _round_up(pl.cdiv(n_lanes, 2), 128)
        if n_lanes % 128 == 0 and half_lanes < n_lanes:
            tile_lanes = half_lanes            # keeps lane blocks 128-aligned
        elif half_rows < n_rows:
            tile_rows = half_rows
        elif half_lanes < n_lanes:
            tile_lanes = half_lanes
        # else: input too small to split; single program is fine.

    grid = (pl.cdiv(n_rows, tile_rows), pl.cdiv(n_lanes, tile_lanes))

    if rows_mode:
        # Bias block index invariant in the inner (lanes) axis -> no re-DMA.
        bias_spec = pl.BlockSpec((tile_rows, 1), lambda i, j: (i, 0))
    else:
        bias_spec = pl.BlockSpec((1, tile_lanes), lambda i, j: (0, j))

    # Derive the scoped-VMEM budget from the actual double-buffered footprint
    # (2 bufs x (x tile + out tile) + 2 x padded bias tile + slack); clamp
    # under v7x's 64 MiB physical VMEM.
    itemsize = jnp.dtype(x_nchw.dtype).itemsize
    x_tile_bytes = tile_rows * tile_lanes * itemsize
    if rows_mode:
        bias_pad_bytes = _round_up(tile_rows, 8) * 128 * 4
    else:
        bias_pad_bytes = 8 * _round_up(tile_lanes, 128) * 4
    vmem_bytes = 4 * x_tile_bytes + 2 * bias_pad_bytes + (2 << 20)
    vmem_bytes = max(4 << 20, min(vmem_bytes, 56 << 20))

    cost = pl.CostEstimate(
        flops=2 * n_rows * n_lanes,
        transcendentals=0,
        bytes_accessed=2 * n_rows * n_lanes * itemsize,
    )

    out = pl.pallas_call(
        _bias_swarm_kernel,
        out_shape=jax.ShapeDtypeStruct((n_rows, n_lanes), x_nchw.dtype),
        grid=grid,
        in_specs=[
            pl.BlockSpec(memory_space=pltpu.MemorySpace.SMEM),            # sum(w)
            pl.BlockSpec((tile_rows, tile_lanes), lambda i, j: (i, j)),   # x tile
            bias_spec,                                                    # bias
        ],
        out_specs=pl.BlockSpec((tile_rows, tile_lanes), lambda i, j: (i, j)),
        compiler_params=pltpu.CompilerParams(
            dimension_semantics=("parallel", "parallel"),
            vmem_limit_bytes=vmem_bytes,
        ),
        cost_estimate=cost,
    )(w_sum, x_2d, bias_2d)

    return out.reshape(B, C, H, W)    # free reshape back, no transpose


def _reference(x_nchw, expert_biases, agg_weights):
    """Pure-JAX reference of the same semantics (per-expert sum)."""
    x = x_nchw.astype(jnp.float32)
    outs = x[None] + expert_biases[:, None, :, None, None].astype(jnp.float32)
    y = jnp.einsum("e,ebchw->bchw", agg_weights.astype(jnp.float32), outs)
    return y.astype(x_nchw.dtype)


if __name__ == "__main__":
    key = jax.random.PRNGKey(0)
    k_x, k_b, k_w = jax.random.split(key, 3)

    E = 3  # number of bias experts (len(self.experts) != 0 — assert holds)
    assert E != 0  # mirrors the reference forward's assertion

    # Case 1: lane-dense spatial (H*W multiple of 128) -> rows-mode layout.
    B, C, H, W = 2, 4, 16, 16
    x = jax.random.normal(k_x, (B, C, H, W), dtype=jnp.float32)
    expert_biases = 0.1 * jax.random.normal(k_b, (E, C), dtype=jnp.float32)
    agg_weights = jax.nn.softmax(jax.random.normal(k_w, (E,), dtype=jnp.float32))

    y = bias_iden_swarm(x, expert_biases, agg_weights)
    jax.block_until_ready(y)
    y_ref = _reference(x, expert_biases, agg_weights)
    assert y.shape == (B, C, H, W)
    assert jnp.allclose(y, y_ref, atol=1e-5, rtol=1e-5), "mismatch (rows mode)"

    # Case 2: ragged spatial (7x7=49, not a multiple of 128) -> lanes-mode.
    B2, C2, H2, W2 = 2, 4, 7, 7
    x2 = jax.random.normal(k_x, (B2, C2, H2, W2), dtype=jnp.float32)
    y2 = bias_iden_swarm(x2, expert_biases, agg_weights)
    jax.block_until_ready(y2)
    y2_ref = _reference(x2, expert_biases, agg_weights)
    assert y2.shape == (B2, C2, H2, W2)
    assert jnp.allclose(y2, y2_ref, atol=1e-5, rtol=1e-5), "mismatch (lanes mode)"

    print("KERNEL_OK")
</pallas_src>

<mosaic_0001>
module attributes {stable_mosaic.version = 11 : i64} {
  func.func @_bias_swarm_kernel(%arg0: i32, %arg1: i32, %arg2: memref<1x1xf32, #tpu.memory_space<smem>>, %arg3: memref<8x128xf32, #tpu.memory_space<vmem>>, %arg4: memref<8x1xf32, #tpu.memory_space<vmem>>, %arg5: memref<8x128xf32, #tpu.memory_space<vmem>>) attributes {dimension_semantics = [#tpu.dimension_semantics<parallel>, #tpu.dimension_semantics<parallel>], iteration_bounds = array<i64: 1, 2>, scalar_prefetch = 0 : i64, scratch_operands = 0 : i64, tpu.core_type = #tpu.core_type<tc>, window_params = [{transform_indices = @transform_0, window_bounds = array<i64: 1, 1>}, {transform_indices = @transform_1, window_bounds = array<i64: 8, 128>}, {transform_indices = @transform_2, window_bounds = array<i64: 8, 1>}, {transform_indices = @transform_3, window_bounds = array<i64: 8, 128>}]} {
    %c0 = arith.constant 0 : index
    %c0_0 = arith.constant 0 : index
    %0 = memref.load %arg2[%c0, %c0_0] : memref<1x1xf32, #tpu.memory_space<smem>>
    %c0_1 = arith.constant 0 : index
    %c0_2 = arith.constant 0 : index
    %1 = vector.load %arg3[%c0_1, %c0_2] : memref<8x128xf32, #tpu.memory_space<vmem>>, vector<8x128xf32>
    %2 = vector.broadcast %0 : f32 to vector<8x128xf32>
    %3 = arith.mulf %1, %2 : vector<8x128xf32>
    %c0_3 = arith.constant 0 : index
    %c0_4 = arith.constant 0 : index
    %4 = vector.load %arg4[%c0_3, %c0_4] : memref<8x1xf32, #tpu.memory_space<vmem>>, vector<8x1xf32>
    %5 = vector.broadcast %4 : vector<8x1xf32> to vector<8x128xf32>
    %6 = arith.addf %3, %5 : vector<8x128xf32>
    %c0_5 = arith.constant 0 : index
    %c0_6 = arith.constant 0 : index
    %7 = vector.load %arg5[%c0_5, %c0_6] : memref<8x128xf32, #tpu.memory_space<vmem>>, vector<8x128xf32>
    tpu.vector_store %arg5[%c0_5, %c0_6], %6 {strides = array<i32>} : memref<8x128xf32, #tpu.memory_space<vmem>>, vector<8x128xf32>,
    return
  }
  func.func @transform_0(%arg0: i32, %arg1: i32) -> (i32, i32) {
    %c0_i32 = arith.constant 0 : i32
    %c0_i32_0 = arith.constant 0 : i32
    %c0_i32_1 = arith.constant 0 : i32
    return %c0_i32, %c0_i32_0 : i32, i32
  }
  func.func @transform_1(%arg0: i32, %arg1: i32) -> (i32, i32) {
    %c0_i32 = arith.constant 0 : i32
    return %arg0, %arg1 : i32, i32
  }
  func.func @transform_2(%arg0: i32, %arg1: i32) -> (i32, i32) {
    %c0_i32 = arith.constant 0 : i32
    %c0_i32_0 = arith.constant 0 : i32
    return %arg0, %c0_i32 : i32, i32
  }
  func.func @transform_3(%arg0: i32, %arg1: i32) -> (i32, i32) {
    %c0_i32 = arith.constant 0 : i32
    return %arg0, %arg1 : i32, i32
  }
}

</mosaic_0001>

<llo_original>
// kernel: tile.0
$region0: #{tile.0}
  %s0 = inlined_call_operand.vmem [shape: f32[2,4], index: 0, kind: input, shape index: {}]
  %s1 = inlined_call_operand.vmem [shape: f32[8,1], index: 1, kind: output, shape index: {}]
  $region1: #{tile.0} parent=0
    #allocation0 [shape = 'u8[4096]{0}', space=vmem, size = 0x1000, scoped, tag = 'scoped mem for input reshape']
    %s3 = sshll.u32 1, 2
    %s4 = ssub.s32 %s3, 1
    %v5 = vld [vmem:[%s0] sm:%s4]
    %6 = vst [vmem:[#allocation0] sm:%s4] %v5
    %v7 = vld [vmem:[#allocation0] sm:$0x3]
    %vm8 = vcmask 7168
    %9 = vst.msk [vmem:[%s1] ss:$4 sm:$0x3] %vm8, %v7
    %v10 = vld [vmem:[#allocation0] sm:$0x3]
    %11 = vrot.lane.b32.xlu0 %v10, 127
    %v12 = vpop.permute.xlu0 %11
    %vm13 = vcmask 7168
    %s14 = scalar_lea.vmem %s1, 1
    %15 = vst.msk [vmem:[%s14] ss:$4 sm:$0x3] %vm13, %v12
    %v16 = vld [vmem:[#allocation0] sm:$0x3]
    %17 = vrot.lane.b32.xlu0 %v16, 126
    %v18 = vpop.permute.xlu0 %17
    %vm19 = vcmask 7168
    %s20 = scalar_lea.vmem %s1, 2
    %21 = vst.msk [vmem:[%s20] ss:$4 sm:$0x3] %vm19, %v18
    %v22 = vld [vmem:[#allocation0] sm:$0x3]
    %23 = vrot.lane.b32.xlu0 %v22, 125
    %v24 = vpop.permute.xlu0 %23
    %vm25 = vcmask 7168
    %s26 = scalar_lea.vmem %s1, 3
    %27 = vst.msk [vmem:[%s26] ss:$4 sm:$0x3] %vm25, %v24

// kernel: tile.8
$region0: #{tile.8}
  #allocation0 [shape = 's32[1]{0}', space=sflag, size = 0x4, scoped, tag = 'scoped memory for tile.8']
  %s0 = inlined_call_operand.vmem [shape: f32[4], index: 0, kind: input, shape index: {}]
  %s1 = inlined_call_operand.vmem [shape: f32[2,4], index: 1, kind: output, shape index: {}]
  // Predicated region
  $region2: #{tile.8} parent=0 // pred_check
    _
  $region3: #{tile.8} parent=0 // pred_check_branch
    %3 = sbr.rel (0) target = $region5
  $region4: #{tile.8} parent=0 // pred_region
    _
  $region5: #{tile.8} parent=0 // pred_fallthru
    _
  %v4 = vld [vmem:[%s0] ss:$0 sm:$0xff]
  %5 = vst [vmem:[%s1] sm:$0x3] %v4

// kernel: bias_iden_swarm.1
$region0: #{bias_iden_swarm.1}
  #allocation0 [shape = 'u32[]', space=smem, size = 0x4, offset = 0x4, fixed_abs, tag = 'smem constant byte address 0x4 - core index']
  #allocation1 [shape = 'u32[144,128]{1,0:T(1,128)}', space=vmem, size = 0x12000, scoped, tag = 'internal scratch']
  #allocation2 [shape = 'f32[1,1]{1,0:T(1,128)S(6)}', space=smem, size = 0x200, scoped, tag = 'scoped memory for bias_iden_swarm.1']
  %s0 = inlined_call_operand.<no memory space> [shape: f32[1,1], index: 0, kind: input, shape index: {}]
  %s1 = inlined_call_operand.vmem [shape: f32[8,256], index: 1, kind: input, shape index: {}]
  %s2 = inlined_call_operand.vmem [shape: f32[8,1], index: 2, kind: input, shape index: {}]
  %s3 = inlined_call_operand.vmem [shape: f32[8,256], index: 3, kind: output, shape index: {}]
  %s4 = sld [smem:[#allocation0]]
  $region45: #{bias_iden_swarm.1} parent=0
    _
  %s6 = ssub.s32 1, %s4
  %s7 = scalar_select 0, %s6, %s4
  %8 = sst [smem:[#allocation2]] %s0
  loop: start=0, step=1, limit=4
  $region2: #{bias_iden_swarm.1} parent=0 // loop_pre_header
    _
  $region3: #{bias_iden_swarm.1} parent=0 // loop_header
    %s10 = sphi 0, %s14
    %p11 = scmp.ge.s32.totalorder %s10, 4
    %s17 = sphi 0, %s29
    %s18 = sphi 0, %s25
    %s19 = sphi 0, %s17
    %s20 = sphi 0, %s18
    %s21 = sphi 0, %s19
    %s22 = sphi 0, %s20
    %s30 = sphi 0, %s30
    %s32 = sphi 0, %s30
    %s33 = sphi 0, %s32
    %s47 = sphi 0, %s33
    %s55 = sphi 0, %s57
    %s58 = sphi 0, %s55
    %s59 = sphi 0, %s58
    %s75 = sphi 0, %s59
    %s81 = sphi 0, %s83
    %s84 = sphi 0, %s81
    %s85 = sphi 0, %s84
    %s101 = sphi 0, %s85
    %s109 = sphi 0, %s111
    %s112 = sphi 0, %s109
    %s113 = sphi 0, %s112
    %s129 = sphi 0, %s113
  $region4: #{bias_iden_swarm.1} parent=0 // loop_header_branch
    %13 = sbr.rel (%p11) target = $region8
  $region5: #{bias_iden_swarm.1} parent=0 // loop_body
    %s15 = ssub.s32 %s10, 1
    %s16 = ssub.s32 %s10, 2
    %s23 = sadd.s32 1, %s18
    %p24 = scmp.ge.s32.totalorder %s23, 2
    %s25 = scalar_select %p24, 0, %s23
    %s26 = sadd.s32 1, %s17
    %s27 = scalar_select %p24, %s26, %s17
    %p28 = scmp.ge.s32.totalorder %s27, 1
    %s29 = scalar_select %p28, 0, %s27
    %s31 = sadd.s32 %s30, 1
    %p34 = scmp.eq.s32.totalorder %s10, 1
    %p35 = scmp.ne.s32.totalorder %s30, %s32
    %p36 = scmp.eq.s32.totalorder %s10, 0
    %p37 = por %p35, %p36
    %p38 = scmp.ne.s32.totalorder %s30, %s32
    %p39 = scmp.eq.s32.totalorder %s15, 1
    %p40 = por %p38, %p39
    %p41 = scmp.ne.s32.totalorder %s32, %s33
    %p42 = scmp.eq.s32.totalorder %s15, 0
    %p43 = por %p41, %p42
    %p44 = scmp.ne.s32.totalorder %s32, %s33
    %p45 = scmp.eq.s32.totalorder %s16, 1
    %p46 = por %p44, %p45
    %p48 = scmp.ne.s32.totalorder %s33, %s47
    %p49 = scmp.eq.s32.totalorder %s16, 0
    %p50 = por %p48, %p49
    %s51 = ssub.s32 %s17, %s29
    %s52 = ssub.s32 %s18, %s25
    %s53 = sor.u32 %s51, %s52
    %p54 = scmp.eq.s32.totalorder %s53, 0
    %s56 = sadd.s32 %s55, 1
    %s57 = scalar_select %p54, %s55, %s56
    %p60 = pneg %p54
    %p61 = scmp.eq.s32.totalorder %s10, 1
    %p62 = por %p60, %p61
    %p63 = scmp.ne.s32.totalorder %s55, %s58
    %p64 = scmp.eq.s32.totalorder %s10, 0
    %p65 = por %p63, %p64
    %p66 = scmp.ne.s32.totalorder %s55, %s58
    %p67 = scmp.eq.s32.totalorder %s15, 1
    %p68 = por %p66, %p67
    %p69 = scmp.ne.s32.totalorder %s58, %s59
    %p70 = scmp.eq.s32.totalorder %s15, 0
    %p71 = por %p69, %p70
    %p72 = scmp.ne.s32.totalorder %s58, %s59
    %p73 = scmp.eq.s32.totalorder %s16, 1
    %p74 = por %p72, %p73
    %p76 = scmp.ne.s32.totalorder %s59, %s75
    %p77 = scmp.eq.s32.totalorder %s16, 0
    %p78 = por %p76, %p77
    %s79 = ssub.s32 %s17, %s29
    %p80 = scmp.eq.s32.totalorder %s79, 0
    %s82 = sadd.s32 %s81, 1
    %s83 = scalar_select %p80, %s81, %s82
    %p86 = pneg %p80
    %p87 = scmp.eq.s32.totalorder %s10, 1
    %p88 = por %p86, %p87
    %p89 = scmp.ne.s32.totalorder %s81, %s84
    %p90 = scmp.eq.s32.totalorder %s10, 0
    %p91 = por %p89, %p90
    %p92 = scmp.ne.s32.totalorder %s81, %s84
    %p93 = scmp.eq.s32.totalorder %s15, 1
    %p94 = por %p92, %p93
    %p95 = scmp.ne.s32.totalorder %s84, %s85
    %p96 = scmp.eq.s32.totalorder %s15, 0
    %p97 = por %p95, %p96
    %p98 = scmp.ne.s32.totalorder %s84, %s85
    %p99 = scmp.eq.s32.totalorder %s16, 1
    %p100 = por %p98, %p99
    %p102 = scmp.ne.s32.totalorder %s85, %s101
    %p103 = scmp.eq.s32.totalorder %s16, 0
    %p104 = por %p102, %p103
    %s105 = ssub.s32 %s17, %s29
    %s106 = ssub.s32 %s18, %s25
    %s107 = sor.u32 %s105, %s106
    %p108 = scmp.eq.s32.totalorder %s107, 0
    %s110 = sadd.s32 %s109, 1
    %s111 = scalar_select %p108, %s109, %s110
    %p114 = pneg %p108
    %p115 = scmp.eq.s32.totalorder %s10, 1
    %p116 = por %p114, %p115
    %p117 = scmp.ne.s32.totalorder %s109, %s112
    %p118 = scmp.eq.s32.totalorder %s10, 0
    %p119 = por %p117, %p118
    %p120 = scmp.ne.s32.totalorder %s109, %s112
    %p121 = scmp.eq.s32.totalorder %s15, 1
    %p122 = por %p120, %p121
    %p123 = scmp.ne.s32.totalorder %s112, %s113
    %p124 = scmp.eq.s32.totalorder %s15, 0
    %p125 = por %p123, %p124
    %p126 = scmp.ne.s32.totalorder %s112, %s113
    %p127 = scmp.eq.s32.totalorder %s16, 1
    %p128 = por %p126, %p127
    %p130 = scmp.ne.s32.totalorder %s113, %s129
    %p131 = scmp.eq.s32.totalorder %s16, 0
    %p132 = por %p130, %p131
    %p133 = scmp.le.s32.totalorder 1, %s10
    %p134 = scmp.lt.s32.totalorder %s10, 3
    %p135 = pnand %p133, %p134
    %p136 = pneg %p135
    // Predicated region
    $region9: #{bias_iden_swarm.1} parent=5 // pred_check
      _
    $region10: #{bias_iden_swarm.1} parent=5 // pred_check_branch
      %138 = sbr.rel (%p135) target = $region12
    $region11: #{bias_iden_swarm.1} parent=5 // pred_region
      %s139 = ssub.s32 %s10, 1
      // Predicated region
      $region13: #{bias_iden_swarm.1} parent=11 // pred_check
        %p140 = pneg %p43
      $region14: #{bias_iden_swarm.1} parent=11 // pred_check_branch
        %142 = sbr.rel (%p140) target = $region16
      $region15: #{bias_iden_swarm.1} parent=11 // pred_region
        _
      $region16: #{bias_iden_swarm.1} parent=11 // pred_fallthru
        _
      // Predicated region
      $region17: #{bias_iden_swarm.1} parent=11 // pred_check
        %p143 = pneg %p97
      $region18: #{bias_iden_swarm.1} parent=11 // pred_check_branch
        %145 = sbr.rel (%p143) target = $region20
      $region19: #{bias_iden_swarm.1} parent=11 // pred_region
        %p146 = scmp.lt.s32.totalorder %s19, 0
        %s147 = scalar_select %p146, %s19, 0
        %s148 = smul.addr %s147, 8
        %s149 = scalar_lea.vmem %s2, %s148
      $region20: #{bias_iden_swarm.1} parent=11 // pred_fallthru
        _
    $region12: #{bias_iden_swarm.1} parent=5 // pred_fallthru
      _
    %p150 = scmp.lt.s32.totalorder %s10, 2
    // Predicated region
    $region21: #{bias_iden_swarm.1} parent=5 // pred_check
      %p151 = pneg %p150
    $region22: #{bias_iden_swarm.1} parent=5 // pred_check_branch
      %153 = sbr.rel (%p151) target = $region24
    $region23: #{bias_iden_swarm.1} parent=5 // pred_region
      // Predicated region
      $region25: #{bias_iden_swarm.1} parent=23 // pred_check
        %p154 = pneg %p65
      $region26: #{bias_iden_swarm.1} parent=23 // pred_check_branch
        %156 = sbr.rel (%p154) target = $region28
      $region27: #{bias_iden_swarm.1} parent=23 // pred_region
        %p157 = scmp.lt.s32.totalorder %s17, 0
        %s158 = scalar_select %p157, %s17, 0
        %p159 = scmp.lt.s32.totalorder %s18, 1
        %s160 = scalar_select %p159, %s18, 1
        %s161 = smul.addr %s158, 2
        %s162 = sadd.s32 %s160, %s161
        %s163 = smul.addr %s162, 8
        %s164 = scalar_lea.vmem %s1, %s163
      $region28: #{bias_iden_swarm.1} parent=23 // pred_fallthru
        _
    $region24: #{bias_iden_swarm.1} parent=5 // pred_fallthru
      _
    %p165 = scmp.le.s32.totalorder 1, %s10
    %p166 = scmp.lt.s32.totalorder %s10, 3
    %p167 = pnand %p165, %p166
    %p168 = pneg %p167
    // Predicated region
    $region29: #{bias_iden_swarm.1} parent=5 // pred_check
      _
    $region30: #{bias_iden_swarm.1} parent=5 // pred_check_branch
      %170 = sbr.rel (%p167) target = $region32
    $region31: #{bias_iden_swarm.1} parent=5 // pred_region
      %s171 = ssub.s32 %s10, 1
      %p172 = pneg %p43
      %p173 = pneg %p40
      %p174 = scmp.lt.s32.totalorder %s19, 0
      %s175 = scalar_select %p174, %s19, 0
      %p176 = scmp.lt.s32.totalorder %s20, 1
      %s177 = scalar_select %p176, %s20, 1
      %s178 = smul.addr %s175, 2
      %s179 = sadd.s32 %s177, %s178
      %s180 = smul.addr %s179, 8
      %s181 = scalar_lea.vmem %s1, %s180
      %p182 = pneg %p71
      %p183 = pneg %p68
      %p184 = scmp.lt.s32.totalorder %s19, 0
      %s185 = scalar_select %p184, %s19, 0
      %s186 = smul.addr %s185, 8
      %s187 = scalar_lea.vmem %s2, %s186
      %p188 = pneg %p97
      %p189 = pneg %p94
      %p190 = pneg %p125
      %p191 = pneg %p122
      %p192 = scmp.lt.s32.totalorder %s19, 0
      %s193 = scalar_select %p192, %s19, 0
      %p194 = scmp.lt.s32.totalorder %s20, 1
      %s195 = scalar_select %p194, %s20, 1
      %s196 = smul.addr %s193, 2
      %s197 = sadd.s32 %s195, %s196
      %s198 = smul.addr %s197, 8
      %s199 = scalar_lea.vmem %s3, %s198
      %p200 = scmp.lt.s32.totalorder %s19, 0
      %s201 = scalar_select %p200, %s19, 0
      %p202 = scmp.lt.s32.totalorder %s20, 1
      %s203 = scalar_select %p202, %s20, 1
      %s204 = smul.addr %s201, 2
      %s205 = sadd.s32 %s203, %s204
      %s206 = smul.addr %s205, 8
      %s207 = scalar_lea.vmem %s1, %s206
      %p208 = scmp.lt.s32.totalorder %s19, 0
      %s209 = scalar_select %p208, %s19, 0
      %s210 = smul.addr %s209, 8
      %s211 = scalar_lea.vmem %s2, %s210
      %p212 = scmp.lt.s32.totalorder %s19, 0
      %s213 = scalar_select %p212, %s19, 0
      %p214 = scmp.lt.s32.totalorder %s20, 1
      %s215 = scalar_select %p214, %s20, 1
      %s216 = smul.addr %s213, 2
      %s217 = sadd.s32 %s215, %s216
      %s218 = smul.addr %s217, 8
      %s219 = scalar_lea.vmem %s3, %s218
      %s220 = sld [smem:[#allocation2]]
      %v221 = vld [vmem:[%s207] sm:$0xff]
      %v222 = vstv %s220
      %v223 = vmul.f32 %v221, %v222
      %v224 = vld [vmem:[%s211] sm:$0xff]
      %226 = vset.pattern.permute.xlu0 0
      %227 = vperm.xlu0 %226, %v224
      %v228 = vpop.permute.xlu0 %227
      %v230 = vadd.f32 %v223, %v228
      %231 = vst [vmem:[%s219] sm:$0xff] %v230
      %p232 = scmp.lt.s32.totalorder %s19, 0
      %s233 = scalar_select %p232, %s19, 0
      %p234 = scmp.lt.s32.totalorder %s20, 1
      %s235 = scalar_select %p234, %s20, 1
      %s236 = smul.addr %s233, 2
      %s237 = sadd.s32 %s235, %s236
      %s238 = smul.addr %s237, 8
      %s239 = scalar_lea.vmem %s3, %s238
      // Predicated region
      $region33: #{bias_iden_swarm.1} parent=31 // pred_check
        %p240 = pneg %p122
      $region34: #{bias_iden_swarm.1} parent=31 // pred_check_branch
        %242 = sbr.rel (%p240) target = $region36
      $region35: #{bias_iden_swarm.1} parent=31 // pred_region
        _
      $region36: #{bias_iden_swarm.1} parent=31 // pred_fallthru
        _
    $region32: #{bias_iden_swarm.1} parent=5 // pred_fallthru
      _
    %p243 = scmp.le.s32.totalorder 2, %s10
    // Predicated region
    $region37: #{bias_iden_swarm.1} parent=5 // pred_check
      %p244 = pneg %p243
    $region38: #{bias_iden_swarm.1} parent=5 // pred_check_branch
      %246 = sbr.rel (%p244) target = $region40
    $region39: #{bias_iden_swarm.1} parent=5 // pred_region
      %s247 = ssub.s32 %s10, 2
      // Predicated region
      $region41: #{bias_iden_swarm.1} parent=39 // pred_check
        %p248 = pneg %p128
      $region42: #{bias_iden_swarm.1} parent=39 // pred_check_branch
        %250 = sbr.rel (%p248) target = $region44
      $region43: #{bias_iden_swarm.1} parent=39 // pred_region
        %p251 = scmp.lt.s32.totalorder %s21, 0
        %s252 = scalar_select %p251, %s21, 0
        %p253 = scmp.lt.s32.totalorder %s22, 1
        %s254 = scalar_select %p253, %s22, 1
        %s255 = smul.addr %s252, 2
        %s256 = sadd.s32 %s254, %s255
        %s257 = smul.addr %s256, 8
        %s258 = scalar_lea.vmem %s3, %s257
      $region44: #{bias_iden_swarm.1} parent=39 // pred_fallthru
        _
    $region40: #{bias_iden_swarm.1} parent=5 // pred_fallthru
      _
  $region6: #{bias_iden_swarm.1} parent=0 // loop_footer
    %s14 = sadd.s32 1, %s10
  $region7: #{bias_iden_swarm.1} parent=0 // loop_footer_branch
    %9 = sbr.rel target = $region3
  $region8: #{bias_iden_swarm.1} parent=0 // loop_exit
    _

</llo_original>
